<compile_context>
chip_gen: v7x
topology: tpu7x:2x2x1
jax: 0.10.0
libtpu: 0.0.40
codegen_flags: <defaults>
</compile_context>

<pallas_src>
import functools

import jax
import jax.numpy as jnp
from jax.experimental import pallas as pl
from jax.experimental.pallas import tpu as pltpu


def _round_up(x: int, m: int) -> int:
    return ((x + m - 1) // m) * m


def _pick_tk(hidden: int, tk: int) -> int:
    """Pick a hidden (K) tile that divides `hidden` and is lane-aligned."""
    tk = min(tk, hidden)
    if hidden % tk == 0:
        return tk
    for cand in range((tk // 128) * 128, 0, -128):
        if hidden % cand == 0:
            return cand
    return hidden


def _mlp_kernel(x_ref, w1_ref, w2_ref, o_ref, acc_ref):
    """One (row-tile, hidden-tile) step of out = gelu_tanh(x @ W1) @ W2."""
    k = pl.program_id(1)

    @pl.when(k == 0)
    def _():
        acc_ref[...] = jnp.zeros_like(acc_ref)

    # fc1 partial: full contraction over embed; hidden is split over the k axis.
    # Native-dtype operands (bf16 stays bf16) with f32 accumulation on the MXU.
    h = jnp.dot(x_ref[...], w1_ref[...], preferred_element_type=jnp.float32)

    # GELU (tanh approximation) in f32; elementwise, so exact per hidden chunk.
    g = jax.nn.gelu(h, approximate=True)

    # fc2 partial: cast activation back to the weight dtype for bf16 MXU peak.
    acc_ref[...] += jnp.dot(g.astype(w2_ref.dtype), w2_ref[...],
                            preferred_element_type=jnp.float32)

    @pl.when(k == pl.num_programs(1) - 1)
    def _():
        o_ref[...] = acc_ref[...].astype(o_ref.dtype)


@functools.partial(jax.jit, static_argnames=("tm", "tk"))
def _mlp_pallas_2d(x2d, w1, w2, *, tm, tk):
    n_pad, embed = x2d.shape
    hidden = w1.shape[1]
    grid = (n_pad // tm, hidden // tk)

    dx = x2d.dtype.itemsize
    dw = w1.dtype.itemsize

    # VMEM budget: double-buffered x / out / weight tiles + f32 accumulator
    # + f32 hidden intermediate, with headroom.  Capped well under physical.
    vmem_est = (2 * tm * embed * dx            # x tiles (double-buffered)
                + 2 * tm * embed * dx          # out tiles
                + 2 * embed * tk * dw          # W1 k-slabs
                + 2 * tk * embed * dw          # W2 k-slabs
                + tm * embed * 4               # f32 accumulator scratch
                + tm * tk * 4)                 # f32 hidden intermediate
    vmem_limit = int(min(vmem_est * 3 // 2 + (4 << 20), 96 << 20))

    cost = pl.CostEstimate(
        flops=int(4 * n_pad * embed * hidden),               # two matmuls
        transcendentals=int(n_pad * hidden),                 # tanh
        bytes_accessed=int(2 * n_pad * embed * dx
                           + (w1.size + w2.size) * dw * grid[0]),
    )

    # TODO(synk): if embed < 128 in production, pad embed to a multiple of 128
    # so the output spec is lane-dense (avoids masked vst.msk partial stores).
    return pl.pallas_call(
        _mlp_kernel,
        out_shape=jax.ShapeDtypeStruct((n_pad, embed), x2d.dtype),
        grid_spec=pltpu.PrefetchScalarGridSpec(
            num_scalar_prefetch=0,
            grid=grid,
            in_specs=[
                pl.BlockSpec((tm, embed), lambda i, k: (i, 0)),   # x row tile
                pl.BlockSpec((embed, tk), lambda i, k: (0, k)),   # W1 k-slab
                pl.BlockSpec((tk, embed), lambda i, k: (k, 0)),   # W2 k-slab
            ],
            out_specs=pl.BlockSpec((tm, embed), lambda i, k: (i, 0)),
            scratch_shapes=[pltpu.VMEM((tm, embed), jnp.float32)],
        ),
        compiler_params=pltpu.CompilerParams(
            dimension_semantics=("parallel", "arbitrary"),
            vmem_limit_bytes=vmem_limit,
        ),
        cost_estimate=cost,
    )(x2d, w1, w2)


def mlp_pallas(x, w1, w2, *, tm=256, tk=512):
    """x: [batch, seq, embed]; w1: [embed, hidden]; w2: [hidden, embed]."""
    batch, seq, embed = x.shape
    hidden = w1.shape[1]
    assert w1.shape == (embed, hidden) and w2.shape == (hidden, embed)

    n = batch * seq
    x2d = x.reshape(n, embed)

    # Row tile: multiple of 8 sublanes, not exceeding the (padded) token count.
    tm_eff = min(_round_up(tm, 8), _round_up(n, 8))
    n_pad = _round_up(n, tm_eff)
    if n_pad != n:
        # Zero rows produce zero outputs (gelu(0)=0), sliced off below.
        x2d = jnp.pad(x2d, ((0, n_pad - n), (0, 0)))

    tk_eff = _pick_tk(hidden, tk)

    out2d = _mlp_pallas_2d(x2d, w1, w2, tm=tm_eff, tk=tk_eff)
    if n_pad != n:
        out2d = out2d[:n]
    return out2d.reshape(batch, seq, embed)


def mlp_reference(x, w1, w2):
    xf = x.astype(jnp.float32)
    h = xf @ w1.astype(jnp.float32)
    g = jax.nn.gelu(h, approximate=True)
    return (g @ w2.astype(jnp.float32)).astype(x.dtype)


if __name__ == "__main__":
    key = jax.random.PRNGKey(0)
    kx, k1, k2, kx2, k3, k4 = jax.random.split(key, 6)

    # Test 1: small shapes implied by the module (embed_dim=32, mlp_ratio=4 -> hidden=128).
    batch, seq, embed = 2, 8, 32
    hidden = int(embed * 4.0)
    x = jax.random.normal(kx, (batch, seq, embed), dtype=jnp.float32)
    w1 = jax.random.normal(k1, (embed, hidden), dtype=jnp.float32) / jnp.sqrt(float(embed))
    w2 = jax.random.normal(k2, (hidden, embed), dtype=jnp.float32) / jnp.sqrt(float(hidden))

    out = jax.block_until_ready(mlp_pallas(x, w1, w2))
    ref = mlp_reference(x, w1, w2)
    assert out.shape == (batch, seq, embed)
    assert jnp.allclose(out, ref, atol=2e-3, rtol=2e-3), "mismatch vs reference (test 1)"

    # Test 2: exercise token padding + multi-step hidden (K) accumulation.
    b2, s2, e2 = 2, 24, 128
    h2 = int(e2 * 4.0)
    x_b = jax.random.normal(kx2, (b2, s2, e2), dtype=jnp.float32)
    w1_b = jax.random.normal(k3, (e2, h2), dtype=jnp.float32) / jnp.sqrt(float(e2))
    w2_b = jax.random.normal(k4, (h2, e2), dtype=jnp.float32) / jnp.sqrt(float(h2))

    out_b = jax.block_until_ready(mlp_pallas(x_b, w1_b, w2_b, tm=32, tk=128))
    ref_b = mlp_reference(x_b, w1_b, w2_b)
    assert out_b.shape == (b2, s2, e2)
    assert jnp.allclose(out_b, ref_b, atol=2e-3, rtol=2e-3), "mismatch vs reference (test 2)"

    print("KERNEL_OK")
</pallas_src>

<mosaic_0001>
module attributes {stable_mosaic.version = 11 : i64} {
  func.func @_mlp_kernel(%arg0: i32, %arg1: i32, %arg2: memref<16x32xf32, #tpu.memory_space<vmem>>, %arg3: memref<32x128xf32, #tpu.memory_space<vmem>>, %arg4: memref<128x32xf32, #tpu.memory_space<vmem>>, %arg5: memref<16x32xf32, #tpu.memory_space<vmem>>, %arg6: memref<16x32xf32, #tpu.memory_space<vmem>>) attributes {dimension_semantics = [#tpu.dimension_semantics<parallel>, #tpu.dimension_semantics<arbitrary>], iteration_bounds = array<i64: 1, 1>, scalar_prefetch = 0 : i64, scratch_operands = 1 : i64, tpu.core_type = #tpu.core_type<tc>, window_params = [{transform_indices = @transform_0, window_bounds = array<i64: 16, 32>}, {transform_indices = @transform_1, window_bounds = array<i64: 32, 128>}, {transform_indices = @transform_2, window_bounds = array<i64: 128, 32>}, {transform_indices = @transform_3, window_bounds = array<i64: 16, 32>}]} {
    %c0_i32 = arith.constant 0 : i32
    %0 = arith.cmpi eq, %arg1, %c0_i32 : i32
    %1 = arith.extui %0 : i1 to i32
    %c0_i32_0 = arith.constant 0 : i32
    %2 = arith.cmpi ne, %1, %c0_i32_0 : i32
    scf.if %2 {
      %cst_17 = arith.constant 0.000000e+00 : f32
      %27 = vector.broadcast %cst_17 : f32 to vector<16x32xf32>
      %c0_18 = arith.constant 0 : index
      %c0_19 = arith.constant 0 : index
      %28 = vector.load %arg6[%c0_18, %c0_19] : memref<16x32xf32, #tpu.memory_space<vmem>>, vector<16x32xf32>
      tpu.vector_store %arg6[%c0_18, %c0_19], %27 {strides = array<i32>} : memref<16x32xf32, #tpu.memory_space<vmem>>, vector<16x32xf32>,
    } else {
    }
    %c0 = arith.constant 0 : index
    %c0_1 = arith.constant 0 : index
    %3 = vector.load %arg2[%c0, %c0_1] : memref<16x32xf32, #tpu.memory_space<vmem>>, vector<16x32xf32>
    %c0_2 = arith.constant 0 : index
    %c0_3 = arith.constant 0 : index
    %4 = vector.load %arg3[%c0_2, %c0_3] : memref<32x128xf32, #tpu.memory_space<vmem>>, vector<32x128xf32>
    %cst = arith.constant dense<0.000000e+00> : vector<16x128xf32>
    %5 = tpu.matmul %3, %4, %cst {dimension_numbers = #tpu.dot_dimension_numbers<[1], [0], [0], [1], [0, 0, 1, 1], [], []>} : vector<16x32xf32>, vector<32x128xf32>, vector<16x128xf32> -> vector<16x128xf32>
    %6 = arith.mulf %5, %5 : vector<16x128xf32>
    %7 = arith.mulf %5, %6 : vector<16x128xf32>
    %cst_4 = arith.constant 4.471500e-02 : f32
    %8 = vector.broadcast %cst_4 : f32 to vector<16x128xf32>
    %9 = arith.mulf %8, %7 : vector<16x128xf32>
    %10 = arith.addf %5, %9 : vector<16x128xf32>
    %cst_5 = arith.constant 0.797884583 : f32
    %11 = vector.broadcast %cst_5 : f32 to vector<16x128xf32>
    %12 = arith.mulf %11, %10 : vector<16x128xf32>
    %13 = math.tanh %12 : vector<16x128xf32>
    %cst_6 = arith.constant 1.000000e+00 : f32
    %14 = vector.broadcast %cst_6 : f32 to vector<16x128xf32>
    %15 = arith.addf %14, %13 : vector<16x128xf32>
    %cst_7 = arith.constant 5.000000e-01 : f32
    %16 = vector.broadcast %cst_7 : f32 to vector<16x128xf32>
    %17 = arith.mulf %16, %15 : vector<16x128xf32>
    %18 = arith.mulf %5, %17 : vector<16x128xf32>
    %c0_8 = arith.constant 0 : index
    %c0_9 = arith.constant 0 : index
    %19 = vector.load %arg6[%c0_8, %c0_9] : memref<16x32xf32, #tpu.memory_space<vmem>>, vector<16x32xf32>
    %c0_10 = arith.constant 0 : index
    %c0_11 = arith.constant 0 : index
    %20 = vector.load %arg4[%c0_10, %c0_11] : memref<128x32xf32, #tpu.memory_space<vmem>>, vector<128x32xf32>
    %cst_12 = arith.constant dense<0.000000e+00> : vector<16x32xf32>
    %21 = tpu.matmul %18, %20, %cst_12 {dimension_numbers = #tpu.dot_dimension_numbers<[1], [0], [0], [1], [0, 0, 1, 1], [], []>} : vector<16x128xf32>, vector<128x32xf32>, vector<16x32xf32> -> vector<16x32xf32>
    %22 = arith.addf %19, %21 : vector<16x32xf32>
    %c0_13 = arith.constant 0 : index
    %c0_14 = arith.constant 0 : index
    %23 = vector.load %arg6[%c0_13, %c0_14] : memref<16x32xf32, #tpu.memory_space<vmem>>, vector<16x32xf32>
    tpu.vector_store %arg6[%c0_13, %c0_14], %22 {strides = array<i32>} : memref<16x32xf32, #tpu.memory_space<vmem>>, vector<16x32xf32>,
    %c0_i32_15 = arith.constant 0 : i32
    %24 = arith.cmpi eq, %arg1, %c0_i32_15 : i32
    %25 = arith.extui %24 : i1 to i32
    %c0_i32_16 = arith.constant 0 : i32
    %26 = arith.cmpi ne, %25, %c0_i32_16 : i32
    scf.if %26 {
      %c0_17 = arith.constant 0 : index
      %c0_18 = arith.constant 0 : index
      %27 = vector.load %arg6[%c0_17, %c0_18] : memref<16x32xf32, #tpu.memory_space<vmem>>, vector<16x32xf32>
      %c0_19 = arith.constant 0 : index
      %c0_20 = arith.constant 0 : index
      %28 = vector.load %arg5[%c0_19, %c0_20] : memref<16x32xf32, #tpu.memory_space<vmem>>, vector<16x32xf32>
      tpu.vector_store %arg5[%c0_19, %c0_20], %27 {strides = array<i32>} : memref<16x32xf32, #tpu.memory_space<vmem>>, vector<16x32xf32>,
    } else {
    }
    return
  }
  func.func @transform_0(%arg0: i32, %arg1: i32) -> (i32, i32) {
    %c0_i32 = arith.constant 0 : i32
    %c0_i32_0 = arith.constant 0 : i32
    return %arg0, %c0_i32 : i32, i32
  }
  func.func @transform_1(%arg0: i32, %arg1: i32) -> (i32, i32) {
    %c0_i32 = arith.constant 0 : i32
    %c0_i32_0 = arith.constant 0 : i32
    return %c0_i32, %arg1 : i32, i32
  }
  func.func @transform_2(%arg0: i32, %arg1: i32) -> (i32, i32) {
    %c0_i32 = arith.constant 0 : i32
    %c0_i32_0 = arith.constant 0 : i32
    return %arg1, %c0_i32 : i32, i32
  }
  func.func @transform_3(%arg0: i32, %arg1: i32) -> (i32, i32) {
    %c0_i32 = arith.constant 0 : i32
    %c0_i32_0 = arith.constant 0 : i32
    return %arg0, %c0_i32 : i32, i32
  }
}

</mosaic_0001>

<llo_original>
// kernel: _mlp_pallas_2d.1
$region0: #{_mlp_pallas_2d.1}
  #allocation0 [shape = 'u32[]', space=smem, size = 0x4, offset = 0x4, fixed_abs, tag = 'smem constant byte address 0x4 - core index']
  #allocation1 [shape = 'u32[144,128]{1,0:T(1,128)}', space=vmem, size = 0x12000, scoped, tag = 'internal scratch']
  #allocation2 [shape = 'f32[16,32]{1,0:T(8,128)}', space=vmem, size = 0x2000, scoped, tag = 'scratch operand']
  %s0 = inlined_call_operand.vmem [shape: f32[16,32], index: 0, kind: input, shape index: {}]
  %s1 = inlined_call_operand.vmem [shape: f32[32,128], index: 1, kind: input, shape index: {}]
  %s2 = inlined_call_operand.vmem [shape: f32[128,32], index: 2, kind: input, shape index: {}]
  %s3 = inlined_call_operand.hbm [shape: f32[16,32], index: 3, kind: output, shape index: {}]
  %s4 = sld [smem:[#allocation0]]
  $region30: #{_mlp_pallas_2d.1} parent=0
    _
  %s6 = ssub.s32 1, %s4
  %s7 = scalar_select 0, %s6, %s4
  $region1: #{_mlp_pallas_2d.1} parent=0
    #allocation3 [shape = 'u8[8192]{0}', space=vmem, size = 0x2000, scoped, tag = 'output window, operand 0, single buffered']
    #allocation4 [shape = 's32[1]{0}', space=sflag, size = 0x4, scoped, tag = 'scoped memory for _mlp_pallas_2d.1']
    %8 = vsyncpa [#allocation4], 0
    // Predicated region
    $region2: #{_mlp_pallas_2d.1} parent=1 // pred_check
      _
    $region3: #{_mlp_pallas_2d.1} parent=1 // pred_check_branch
      %10 = sbr.rel (0) target = $region5
    $region4: #{_mlp_pallas_2d.1} parent=1 // pred_region
      _
    $region5: #{_mlp_pallas_2d.1} parent=1 // pred_fallthru
      _
    // Predicated region
    $region6: #{_mlp_pallas_2d.1} parent=1 // pred_check
      _
    $region7: #{_mlp_pallas_2d.1} parent=1 // pred_check_branch
      %12 = sbr.rel (0) target = $region9
    $region8: #{_mlp_pallas_2d.1} parent=1 // pred_region
      _
    $region9: #{_mlp_pallas_2d.1} parent=1 // pred_fallthru
      _
    // Predicated region
    $region10: #{_mlp_pallas_2d.1} parent=1 // pred_check
      _
    $region11: #{_mlp_pallas_2d.1} parent=1 // pred_check_branch
      %14 = sbr.rel (0) target = $region13
    $region12: #{_mlp_pallas_2d.1} parent=1 // pred_region
      _
    $region13: #{_mlp_pallas_2d.1} parent=1 // pred_fallthru
      _
    %p15 = scmp.eq.s32.totalorder 0, 0
    // Predicated region
    $region14: #{_mlp_pallas_2d.1} parent=1 // pred_check
      %p16 = pneg %p15
    $region15: #{_mlp_pallas_2d.1} parent=1 // pred_check_branch
      %18 = sbr.rel (%p16) target = $region17
    $region16: #{_mlp_pallas_2d.1} parent=1 // pred_region
      %vm19 = vcmask 261120
      %20 = vst.msk [vmem:[#allocation2] sm:$0xff] %vm19, 0.0
      %21 = vst.msk [vmem:[#allocation2 + $0x8] sm:$0xff] %vm19, 0.0
    $region17: #{_mlp_pallas_2d.1} parent=1 // pred_fallthru
      _
    %v22 = vld [vmem:[%s0] sm:$0xff]
    %v23 = vld [vmem:[%s0 + $0x8] sm:$0xff]
    %v24 = vld [vmem:[%s1] sm:$0xff]
    %v25 = vld [vmem:[%s1 + $0x8] sm:$0xff]
    %v26 = vld [vmem:[%s1 + $0x10] sm:$0xff]
    %v27 = vld [vmem:[%s1 + $0x18] sm:$0xff]
    %vm28 = vcmask 261120
    %v30 = vsel %vm28, %v22, 0
    %v33 = vsel %vm28, %v23, 0
    %35 = vmatprep.subr.mxu0 0.0
    %36 = vmatpush1.msra.mxu0 %v24
    %37 = vmatprep.subr.mxu0 0.0
    %38 = vmatpush1.msra.mxu0 %v25
    %39 = vmatprep.subr.mxu0 0.0
    %40 = vmatpush1.msra.mxu0 %v26
    %41 = vmatprep.subr.mxu0 0.0
    %42 = vmatpush1.msra.mxu0 %v27
    %43 = vmatprep.subr.mxu0 0.0
    %44 = vmatpush1.msra.mxu0 0.0
    %45 = vmatprep.subr.mxu0 0.0
    %46 = vmatpush1.msra.mxu0 0.0
    %47 = vmatprep.subr.mxu0 0.0
    %48 = vmatpush1.msra.mxu0 0.0
    %49 = vmatprep.subr.mxu0 0.0
    %50 = vmatpush1.msra.mxu0 0.0
    %51 = vmatprep.subr.mxu0 0.0
    %52 = vmatpush1.msra.mxu0 0.0
    %53 = vmatprep.subr.mxu0 0.0
    %54 = vmatpush1.msra.mxu0 0.0
    %55 = vmatprep.subr.mxu0 0.0
    %56 = vmatpush1.msra.mxu0 0.0
    %57 = vmatprep.subr.mxu0 0.0
    %58 = vmatpush1.msra.mxu0 0.0
    %59 = vmatprep.subr.mxu0 0.0
    %60 = vmatpush1.msra.mxu0 0.0
    %61 = vmatprep.subr.mxu0 0.0
    %62 = vmatpush1.msra.mxu0 0.0
    %63 = vmatprep.subr.mxu0 0.0
    %64 = vmatpush1.msra.mxu0 0.0
    %65 = vmatprep.subr.mxu0 0.0
    %66 = vmatpush1.msra.mxu0 0.0
    %67 = vmatprep.subr.mxu0 0.0
    %68 = vmatpush1.msra.mxu0 0.0
    %69 = vmatprep.subr.mxu0 0.0
    %70 = vmatpush1.msra.mxu0 0.0
    %71 = vmatprep.subr.mxu0 0.0
    %72 = vmatpush1.msra.mxu0 0.0
    %73 = vmatprep.subr.mxu0 0.0
    %74 = vmatpush1.msra.mxu0 0.0
    %75 = vmatprep.subr.mxu0 0.0
    %76 = vmatpush1.msra.mxu0 0.0
    %77 = vmatprep.subr.mxu0 0.0
    %78 = vmatpush1.msra.mxu0 0.0
    %79 = vmatprep.subr.mxu0 0.0
    %80 = vmatpush1.msra.mxu0 0.0
    %81 = vmatprep.subr.mxu0 0.0
    %82 = vmatpush1.msra.mxu0 0.0
    %83 = vmatprep.subr.mxu0 0.0
    %84 = vmatpush1.msra.mxu0 0.0
    %85 = vmatprep.subr.mxu0 0.0
    %86 = vmatpush1.msra.mxu0 0.0
    %87 = vmatprep.subr.mxu0 0.0
    %88 = vmatpush1.msra.mxu0 0.0
    %89 = vmatprep.subr.mxu0 0.0
    %90 = vmatpush1.msra.mxu0 0.0
    %91 = vmatprep.subr.mxu0 0.0
    %92 = vmatpush1.msra.mxu0 0.0
    %93 = vmatprep.subr.mxu0 0.0
    %94 = vmatpush1.msra.mxu0 0.0
    %95 = vmatprep.subr.mxu0 0.0
    %96 = vmatpush1.msra.mxu0 0.0
    %97 = vmatprep.subr.mxu0 0.0
    %98 = vmatpush1.msra.mxu0 0.0
    %99 = vmatprep.mubr.f32.mxu0 0.0
    %100 = vmatmul.mubr.f32.gmra.mrb[0].mxu0 %v30
    %v101 = vpop.f32.mrb[0].mxu0
    %v102 = vadd.f32 0.0, %v101
    %v103 = vpop.f32.mrb[0].mxu0
    %104 = vmatprep.mubr.f32.mxu0 0.0
    %105 = vmatmul.mubr.f32.gmra.mrb[0].mxu0 %v33
    %v106 = vpop.f32.mrb[0].mxu0
    %v107 = vadd.f32 0.0, %v106
    %v108 = vpop.f32.mrb[0].mxu0
    %109 = vdwg.mxu0
    %v110 = vmul.f32 %v102, %v102
    %v111 = vmul.f32 %v107, %v107
    %v112 = vmul.f32 %v102, %v110
    %v113 = vmul.f32 %v107, %v111
    %v114 = vmul.f32 %v112, 0.044715
    %v115 = vmul.f32 %v113, 0.044715
    %v116 = vadd.f32 %v102, %v114
    %v117 = vadd.f32 %v107, %v115
    %v118 = vmul.f32 %v116, 0.7978846
    %v119 = vmul.f32 %v117, 0.7978846
    %v120 = vtanh.pop %v118
    %v121 = vtanh.pop %v119
    %v122 = vadd.f32 %v120, 1.0
    %v123 = vadd.f32 %v121, 1.0
    %v124 = vmul.f32 %v122, 0.5
    %v125 = vmul.f32 %v123, 0.5
    %v126 = vmul.f32 %v102, %v124
    %v127 = vmul.f32 %v107, %v125
    %v128 = vld [vmem:[#allocation2] sm:$0xff]
    %v129 = vld [vmem:[#allocation2 + $0x8] sm:$0xff]
    %v130 = vld [vmem:[%s2] sm:$0xff]
    %v131 = vld [vmem:[%s2 + $0x8] sm:$0xff]
    %v132 = vld [vmem:[%s2 + $0x10] sm:$0xff]
    %v133 = vld [vmem:[%s2 + $0x18] sm:$0xff]
    %v134 = vld [vmem:[%s2 + $0x20] sm:$0xff]
    %v135 = vld [vmem:[%s2 + $0x28] sm:$0xff]
    %v136 = vld [vmem:[%s2 + $0x30] sm:$0xff]
    %v137 = vld [vmem:[%s2 + $0x38] sm:$0xff]
    %v138 = vld [vmem:[%s2 + $0x40] sm:$0xff]
    %v139 = vld [vmem:[%s2 + $0x48] sm:$0xff]
    %v140 = vld [vmem:[%s2 + $0x50] sm:$0xff]
    %v141 = vld [vmem:[%s2 + $0x58] sm:$0xff]
    %v142 = vld [vmem:[%s2 + $0x60] sm:$0xff]
    %v143 = vld [vmem:[%s2 + $0x68] sm:$0xff]
    %v144 = vld [vmem:[%s2 + $0x70] sm:$0xff]
    %v145 = vld [vmem:[%s2 + $0x78] sm:$0xff]
    %146 = vmatprep.subr.mxu0 0.0
    %147 = vmatpush1.msra.mxu0 %v130
    %148 = vmatprep.subr.mxu0 0.0
    %149 = vmatpush1.msra.mxu0 %v131
    %150 = vmatprep.subr.mxu0 0.0
    %151 = vmatpush1.msra.mxu0 %v132
    %152 = vmatprep.subr.mxu0 0.0
    %153 = vmatpush1.msra.mxu0 %v133
    %154 = vmatprep.subr.mxu0 0.0
    %155 = vmatpush1.msra.mxu0 %v134
    %156 = vmatprep.subr.mxu0 0.0
    %157 = vmatpush1.msra.mxu0 %v135
    %158 = vmatprep.subr.mxu0 0.0
    %159 = vmatpush1.msra.mxu0 %v136
    %160 = vmatprep.subr.mxu0 0.0
    %161 = vmatpush1.msra.mxu0 %v137
    %162 = vmatprep.subr.mxu0 0.0
    %163 = vmatpush1.msra.mxu0 %v138
    %164 = vmatprep.subr.mxu0 0.0
    %165 = vmatpush1.msra.mxu0 %v139
    %166 = vmatprep.subr.mxu0 0.0
    %167 = vmatpush1.msra.mxu0 %v140
    %168 = vmatprep.subr.mxu0 0.0
    %169 = vmatpush1.msra.mxu0 %v141
    %170 = vmatprep.subr.mxu0 0.0
    %171 = vmatpush1.msra.mxu0 %v142
    %172 = vmatprep.subr.mxu0 0.0
    %173 = vmatpush1.msra.mxu0 %v143
    %174 = vmatprep.subr.mxu0 0.0
    %175 = vmatpush1.msra.mxu0 %v144
    %176 = vmatprep.subr.mxu0 0.0
    %177 = vmatpush1.msra.mxu0 %v145
    %178 = vmatprep.subr.mxu0 0.0
    %179 = vmatpush1.msra.mxu0 0.0
    %180 = vmatprep.subr.mxu0 0.0
    %181 = vmatpush1.msra.mxu0 0.0
    %182 = vmatprep.subr.mxu0 0.0
    %183 = vmatpush1.msra.mxu0 0.0
    %184 = vmatprep.subr.mxu0 0.0
    %185 = vmatpush1.msra.mxu0 0.0
    %186 = vmatprep.subr.mxu0 0.0
    %187 = vmatpush1.msra.mxu0 0.0
    %188 = vmatprep.subr.mxu0 0.0
    %189 = vmatpush1.msra.mxu0 0.0
    %190 = vmatprep.subr.mxu0 0.0
    %191 = vmatpush1.msra.mxu0 0.0
    %192 = vmatprep.subr.mxu0 0.0
    %193 = vmatpush1.msra.mxu0 0.0
    %194 = vmatprep.subr.mxu0 0.0
    %195 = vmatpush1.msra.mxu0 0.0
    %196 = vmatprep.subr.mxu0 0.0
    %197 = vmatpush1.msra.mxu0 0.0
    %198 = vmatprep.subr.mxu0 0.0
    %199 = vmatpush1.msra.mxu0 0.0
    %200 = vmatprep.subr.mxu0 0.0
    %201 = vmatpush1.msra.mxu0 0.0
    %202 = vmatprep.subr.mxu0 0.0
    %203 = vmatpush1.msra.mxu0 0.0
    %204 = vmatprep.subr.mxu0 0.0
    %205 = vmatpush1.msra.mxu0 0.0
    %206 = vmatprep.subr.mxu0 0.0
    %207 = vmatpush1.msra.mxu0 0.0
    %208 = vmatprep.subr.mxu0 0.0
    %209 = vmatpush1.msra.mxu0 0.0
    %210 = vmatprep.mubr.f32.mxu0 0.0
    %211 = vmatmul.mubr.f32.gmra.mrb[0].mxu0 %v126
    %v212 = vpop.f32.mrb[0].mxu0
    %v213 = vadd.f32 0.0, %v212
    %v214 = vpop.f32.mrb[0].mxu0
    %215 = vmatprep.mubr.f32.mxu0 0.0
    %216 = vmatmul.mubr.f32.gmra.mrb[0].mxu0 %v127
    %v217 = vpop.f32.mrb[0].mxu0
    %v218 = vadd.f32 0.0, %v217
    %v219 = vpop.f32.mrb[0].mxu0
    %220 = vdwg.mxu0
    %v221 = vadd.f32 %v128, %v213
    %v222 = vadd.f32 %v129, %v218
    %223 = vst.msk [vmem:[#allocation2] sm:$0xff] %vm28, %v221
    %224 = vst.msk [vmem:[#allocation2 + $0x8] sm:$0xff] %vm28, %v222
    // Predicated region
    $region18: #{_mlp_pallas_2d.1} parent=1 // pred_check
      %p225 = pneg %p15
    $region19: #{_mlp_pallas_2d.1} parent=1 // pred_check_branch
      %227 = sbr.rel (%p225) target = $region21
    $region20: #{_mlp_pallas_2d.1} parent=1 // pred_region
      %v228 = vld [vmem:[#allocation2] sm:$0xff]
      %v229 = vld [vmem:[#allocation2 + $0x8] sm:$0xff]
      %230 = vst.msk [vmem:[#allocation3] sm:$0xff] %vm28, %v228
      %231 = vst.msk [vmem:[#allocation3 + $0x8] sm:$0xff] %vm28, %v229
    $region21: #{_mlp_pallas_2d.1} parent=1 // pred_fallthru
      _
    // Predicated region
    $region22: #{_mlp_pallas_2d.1} parent=1 // pred_check
      _
    $region23: #{_mlp_pallas_2d.1} parent=1 // pred_check_branch
      %233 = sbr.rel (0) target = $region25
    $region24: #{_mlp_pallas_2d.1} parent=1 // pred_region
      %s235 = ssub.s32 256, 256
      %236 = vsyncadd [#allocation4], %s235
      %s237 = sshll.u32 [#allocation3], 4
      %s238 = int_to_ptr.vmem [resolvable:$true] %s237
      %243 = dma.vmem_to_hbm [thread:$0]  %s238, 256, %s3, [#allocation4], 128, 128, 8
    $region25: #{_mlp_pallas_2d.1} parent=1 // pred_fallthru
      _
    // Predicated region
    $region26: #{_mlp_pallas_2d.1} parent=1 // pred_check
      _
    $region27: #{_mlp_pallas_2d.1} parent=1 // pred_check_branch
      %245 = sbr.rel (0) target = $region29
    $region28: #{_mlp_pallas_2d.1} parent=1 // pred_region
      %246 = dma.done [#allocation4], 256
    $region29: #{_mlp_pallas_2d.1} parent=1 // pred_fallthru
      _
    %247 = vsyncpa [#allocation4], 1

</llo_original>
